<compile_context>
chip_gen: v6e
topology: v6e:2x2x1
jax: 0.10.0
libtpu: 0.0.40
codegen_flags: <defaults>
</compile_context>

<pallas_src>
import functools
import math

import jax
import jax.numpy as jnp
from jax.experimental import pallas as pl
from jax.experimental.pallas import tpu as pltpu


def _round_up(x, m):
    return ((x + m - 1) // m) * m


def _proxy_anchor_kernel(x_ref, p_ref, t_ref, pos_ref, neg_ref, *, nb_classes, tc):
    # x_ref: (TB, D)  pre-normalized, pre-scaled by alpha (compute dtype)
    # p_ref: (TC, D)  pre-normalized proxies (compute dtype)
    # t_ref: (TB, 1)  int32 labels (padded rows = -1)
    # pos_ref / neg_ref: (1, TC) f32 output blocks, resident across the batch axis.
    ci = pl.program_id(0)
    bi = pl.program_id(1)

    @pl.when(bi == 0)
    def _():
        pos_ref[...] = jnp.zeros_like(pos_ref)
        neg_ref[...] = jnp.zeros_like(neg_ref)

    # MXU: contract dim 1 of both operands (no explicit transpose / relayout).
    # Inputs were pre-scaled by alpha, so s = alpha * cos(X, P).
    s = jax.lax.dot_general(
        x_ref[...], p_ref[...],
        dimension_numbers=(((1,), (1,)), ((), ())),
        preferred_element_type=jnp.float32)                      # (TB, TC) f32

    t = t_ref[...]                                               # (TB, 1) i32
    # Lane-only class ids: (1, TC), broadcast against (TB, 1) labels.
    cls_ids = ci * tc + jax.lax.broadcasted_iota(jnp.int32, (1, tc), 1)
    row_valid = t >= 0                                           # (TB, 1)
    col_valid = cls_ids < nb_classes                             # (1, TC)
    pos_mask = cls_ids == t                                      # (TB, TC)
    neg_mask = jnp.logical_and(jnp.logical_and(row_valid, col_valid),
                               jnp.logical_not(pos_mask))

    # Positive branch: at most one positive class per row in this tile, so only
    # TB exps are needed (EUP) instead of TB*TC. exp(alpha*mrg) is folded into
    # the wrapper epilogue.
    s_pos = jnp.sum(jnp.where(pos_mask, s, 0.0), axis=1, keepdims=True)   # (TB, 1)
    pos_exp_row = jnp.exp(-s_pos)                                         # (TB, 1)
    pos_ref[...] += jnp.sum(jnp.where(pos_mask, pos_exp_row, 0.0),
                            axis=0, keepdims=True)

    # Negative branch: full-tile exp in f32 (|s| <= alpha, exp(alpha) safe in f32).
    # TODO(synk): on v6e/v7x a bf16 exp (bf16 EUP) would roughly double EUP
    # throughput if the bundle dump shows EUP binding; kept f32 for accuracy.
    neg_ref[...] += jnp.sum(jnp.where(neg_mask, jnp.exp(s), 0.0),
                            axis=0, keepdims=True)


def proxy_anchor_loss(X, T, proxies, mrg=0.1, alpha=32.0,
                      tb=None, tc=None, compute_dtype=None):
    """X: (B, D) float, T: (B,) int labels, proxies: (C, D) float. Returns scalar f32.

    compute_dtype: dtype fed to the MXU (and streamed from HBM). jnp.bfloat16 is
    3-4x faster on the matmul and halves the proxy HBM bytes, but alpha amplifies
    the bf16 cos error inside exp; jnp.float32 keeps strict reference accuracy.
    Defaults to the input dtype of X.
    """
    B, D = X.shape
    C, D2 = proxies.shape
    assert D == D2
    if compute_dtype is None:
        compute_dtype = X.dtype

    # --- one-time normalization in the wrapper (single fused XLA op) ----------
    Xf = X.astype(jnp.float32)
    Pf = proxies.astype(jnp.float32)
    # Matches torch l2_norm: x / sqrt(sum(x^2) + 1e-12).
    Xn = Xf / jnp.sqrt(jnp.sum(Xf * Xf, axis=1, keepdims=True) + 1e-12)
    Pn = Pf / jnp.sqrt(jnp.sum(Pf * Pf, axis=1, keepdims=True) + 1e-12)
    # Fold alpha into X (exact when alpha is a power of two, e.g. 32, or when the
    # matmul stays f32; otherwise the extra rounding is <= 2^-9 relative).
    Xs = (jnp.float32(alpha) * Xn).astype(compute_dtype)
    Ps = Pn.astype(compute_dtype)

    # --- generation-aware VMEM budget & tile sizes ----------------------------
    try:
        info = pltpu.get_tpu_info()
        vmem_cap = int(getattr(info, "vmem_capacity_bytes", 64 * 1024 * 1024))
    except Exception:  # pragma: no cover - conservative fallback (v7x per-TC)
        vmem_cap = 64 * 1024 * 1024
    small_vmem = vmem_cap <= 64 * 1024 * 1024            # v7x: 64 MiB physical/TC
    vmem_limit = int(min(vmem_cap * 3 // 4, 112 * 1024 * 1024))

    itemsize = jnp.dtype(compute_dtype).itemsize
    if tc is None:
        # Cap the per-buffer proxy tile (double-buffered) so proxies + X tiles +
        # (tb x tc) f32 intermediates stay well inside the scoped VMEM limit.
        proxy_buf_budget = (2 if small_vmem else 4) * 1024 * 1024
        tc = (proxy_buf_budget // max(D * itemsize, 1)) // 128 * 128
        tc = max(128, min(2048, tc))
        tc = min(tc, _round_up(C, 128))
    if tb is None:
        tb_cap = 256 if (small_vmem or D > 1024) else 512
        tb = min(_round_up(B, 8), tb_cap)

    C_pad = _round_up(C, tc)
    B_pad = _round_up(B, tb)

    Xp = Xs if B_pad == B else jnp.zeros((B_pad, D), Xs.dtype).at[:B].set(Xs)
    Pp = Ps if C_pad == C else jnp.zeros((C_pad, D), Ps.dtype).at[:C].set(Ps)
    # Padded rows get label -1 so they never match a class and drop out of the
    # negative sums.
    # TODO(synk): labels could live in SMEM via scalar prefetch; the (TB, 1)
    # VMEM block is tiny metadata so it is kept on the simple vector path.
    Tp = jnp.full((B_pad, 1), -1, dtype=jnp.int32).at[:B, 0].set(T.astype(jnp.int32))

    n_c_tiles = C_pad // tc
    n_b_tiles = B_pad // tb

    kernel = functools.partial(_proxy_anchor_kernel, nb_classes=C, tc=tc)

    pos_sum, neg_sum = pl.pallas_call(
        kernel,
        out_shape=(
            jax.ShapeDtypeStruct((1, C_pad), jnp.float32),  # per-class sum exp(-alpha*cos)
            jax.ShapeDtypeStruct((1, C_pad), jnp.float32),  # per-class sum exp(+alpha*cos) over negatives
        ),
        grid=(n_c_tiles, n_b_tiles),
        in_specs=[
            pl.BlockSpec((tb, D), lambda ci, bi: (bi, 0)),   # X tile (alpha-scaled, normalized)
            pl.BlockSpec((tc, D), lambda ci, bi: (ci, 0)),   # proxy tile (normalized)
            pl.BlockSpec((tb, 1), lambda ci, bi: (bi, 0)),   # labels tile
        ],
        out_specs=(
            pl.BlockSpec((1, tc), lambda ci, bi: (0, ci)),   # resident across bi
            pl.BlockSpec((1, tc), lambda ci, bi: (0, ci)),
        ),
        compiler_params=pltpu.CompilerParams(
            dimension_semantics=("parallel", "arbitrary"),
            vmem_limit_bytes=vmem_limit),
    )(Xp, Pp, Tp)

    # --- tiny scalar epilogue (keeps the class grid axis fully parallel) ------
    K = jnp.exp(jnp.float32(alpha) * jnp.float32(mrg))       # exp(alpha * mrg)
    p_sim = pos_sum[0, :C]
    n_sim = neg_sum[0, :C]
    # has-positive computed from T alone (O(B)); num_valid guarded with max(.,1)
    # (the torch module would divide by zero when no class has a positive).
    has_pos = (jnp.zeros((C,), jnp.float32).at[T].add(1.0)) > 0.0
    num_valid = jnp.maximum(jnp.sum(has_pos.astype(jnp.float32)), 1.0)
    pos_term = jnp.sum(jnp.log(1.0 + K * p_sim)) / num_valid
    neg_term = jnp.sum(jnp.log(1.0 + K * n_sim)) / float(C)
    return pos_term + neg_term


if __name__ == "__main__":
    # Small shapes consistent with the module's forward:
    #   X: (batch, sz_embed) embeddings, T: (batch,) integer class labels.
    batch = 8
    sz_embed = 32
    nb_classes = 16
    mrg = 0.1
    alpha = 32.0

    key = jax.random.PRNGKey(0)
    k_x, k_t, k_p = jax.random.split(key, 3)

    X = jax.random.normal(k_x, (batch, sz_embed), dtype=jnp.float32)
    T = jax.random.randint(k_t, (batch,), 0, nb_classes, dtype=jnp.int32)

    # Deterministic proxies: kaiming_normal_(mode='fan_out') on (nb_classes, sz_embed)
    # -> std = sqrt(2 / nb_classes)
    std = math.sqrt(2.0 / nb_classes)
    proxies = jax.random.normal(k_p, (nb_classes, sz_embed), dtype=jnp.float32) * std

    # Pure-JAX reference of the same math (mirrors the PyTorch module).
    def ref_loss(X, T, P):
        xn = X / jnp.sqrt(jnp.sum(X * X, axis=1, keepdims=True) + 1e-12)
        pn = P / jnp.sqrt(jnp.sum(P * P, axis=1, keepdims=True) + 1e-12)
        cos = xn @ pn.T
        oh = jax.nn.one_hot(T, nb_classes, dtype=jnp.float32)
        pos_exp = jnp.exp(-alpha * (cos - mrg))
        neg_exp = jnp.exp(alpha * (cos + mrg))
        p_sum = jnp.sum(jnp.where(oh == 1.0, pos_exp, 0.0), axis=0)
        n_sum = jnp.sum(jnp.where(oh == 0.0, neg_exp, 0.0), axis=0)
        num_valid = jnp.sum((jnp.sum(oh, axis=0) != 0).astype(jnp.float32))
        return (jnp.sum(jnp.log(1 + p_sum)) / num_valid
                + jnp.sum(jnp.log(1 + n_sum)) / nb_classes)

    ref = ref_loss(X, T, proxies)

    # Strict-f32 MXU path: bit-faithful to the reference math (alpha=32 would
    # amplify bf16 cos error inside exp, so f32 is the accuracy-checked path).
    loss_f32 = proxy_anchor_loss(X, T, proxies, mrg=mrg, alpha=alpha,
                                 compute_dtype=jnp.float32)
    jax.block_until_ready(loss_f32)
    assert jnp.allclose(loss_f32, ref, rtol=1e-4, atol=1e-4), (loss_f32, ref)

    # Fast bf16 MXU path (3-4x matmul, half the proxy HBM bytes); loss drifts a
    # few percent because alpha amplifies the bf16 cos error — loose sanity check.
    loss_bf16 = proxy_anchor_loss(X, T, proxies, mrg=mrg, alpha=alpha,
                                  compute_dtype=jnp.bfloat16)
    jax.block_until_ready(loss_bf16)
    assert bool(jnp.isfinite(loss_bf16)), loss_bf16
    assert abs(float(loss_bf16) - float(ref)) <= 0.5 * abs(float(ref)) + 0.5, (
        loss_bf16, ref)

    print("KERNEL_OK")
</pallas_src>

<mosaic_0001>
module attributes {stable_mosaic.version = 11 : i64} {
  func.func @_proxy_anchor_kernel(%arg0: i32, %arg1: i32, %arg2: memref<8x32xf32, #tpu.memory_space<vmem>>, %arg3: memref<128x32xf32, #tpu.memory_space<vmem>>, %arg4: memref<8x1xi32, #tpu.memory_space<vmem>>, %arg5: memref<1x128xf32, #tpu.memory_space<vmem>>, %arg6: memref<1x128xf32, #tpu.memory_space<vmem>>) attributes {dimension_semantics = [#tpu.dimension_semantics<parallel>, #tpu.dimension_semantics<arbitrary>], iteration_bounds = array<i64: 1, 1>, scalar_prefetch = 0 : i64, scratch_operands = 0 : i64, tpu.core_type = #tpu.core_type<tc>, window_params = [{transform_indices = @transform_0, window_bounds = array<i64: 8, 32>}, {transform_indices = @transform_1, window_bounds = array<i64: 128, 32>}, {transform_indices = @transform_2, window_bounds = array<i64: 8, 1>}, {transform_indices = @transform_3, window_bounds = array<i64: 1, 128>}, {transform_indices = @transform_4, window_bounds = array<i64: 1, 128>}]} {
    %c0_i32 = arith.constant 0 : i32
    %0 = arith.cmpi eq, %arg1, %c0_i32 : i32
    %1 = arith.extui %0 : i1 to i32
    %c0_i32_0 = arith.constant 0 : i32
    %2 = arith.cmpi ne, %1, %c0_i32_0 : i32
    scf.if %2 {
      %cst_23 = arith.constant 0.000000e+00 : f32
      %47 = vector.broadcast %cst_23 : f32 to vector<1x128xf32>
      %c0_24 = arith.constant 0 : index
      %c0_25 = arith.constant 0 : index
      %48 = vector.load %arg5[%c0_24, %c0_25] : memref<1x128xf32, #tpu.memory_space<vmem>>, vector<1x128xf32>
      tpu.vector_store %arg5[%c0_24, %c0_25], %47 {strides = array<i32>} : memref<1x128xf32, #tpu.memory_space<vmem>>, vector<1x128xf32>,
      %cst_26 = arith.constant 0.000000e+00 : f32
      %49 = vector.broadcast %cst_26 : f32 to vector<1x128xf32>
      %c0_27 = arith.constant 0 : index
      %c0_28 = arith.constant 0 : index
      %50 = vector.load %arg6[%c0_27, %c0_28] : memref<1x128xf32, #tpu.memory_space<vmem>>, vector<1x128xf32>
      tpu.vector_store %arg6[%c0_27, %c0_28], %49 {strides = array<i32>} : memref<1x128xf32, #tpu.memory_space<vmem>>, vector<1x128xf32>,
    } else {
    }
    %c0 = arith.constant 0 : index
    %c0_1 = arith.constant 0 : index
    %3 = vector.load %arg2[%c0, %c0_1] : memref<8x32xf32, #tpu.memory_space<vmem>>, vector<8x32xf32>
    %c0_2 = arith.constant 0 : index
    %c0_3 = arith.constant 0 : index
    %4 = vector.load %arg3[%c0_2, %c0_3] : memref<128x32xf32, #tpu.memory_space<vmem>>, vector<128x32xf32>
    %cst = arith.constant dense<0.000000e+00> : vector<8x128xf32>
    %5 = tpu.matmul %3, %4, %cst {dimension_numbers = #tpu.dot_dimension_numbers<[1], [1], [0], [0], [0, 0, 1, 0], [], []>} : vector<8x32xf32>, vector<128x32xf32>, vector<8x128xf32> -> vector<8x128xf32>
    %c0_4 = arith.constant 0 : index
    %c0_5 = arith.constant 0 : index
    %6 = vector.load %arg4[%c0_4, %c0_5] : memref<8x1xi32, #tpu.memory_space<vmem>>, vector<8x1xi32>
    %c128_i32 = arith.constant 128 : i32
    %7 = arith.muli %arg0, %c128_i32 : i32
    %8 = tpu.iota {dimensions = array<i32: 1>} : vector<1x128xi32>
    %9 = vector.broadcast %7 : i32 to vector<1x128xi32>
    %10 = arith.addi %9, %8 : vector<1x128xi32>
    %c0_i32_6 = arith.constant 0 : i32
    %11 = vector.broadcast %c0_i32_6 : i32 to vector<8x1xi32>
    %12 = arith.cmpi sge, %6, %11 : vector<8x1xi32>
    %c16_i32 = arith.constant 16 : i32
    %13 = vector.broadcast %c16_i32 : i32 to vector<1x128xi32>
    %14 = arith.cmpi slt, %10, %13 : vector<1x128xi32>
    %15 = vector.broadcast %10 : vector<1x128xi32> to vector<8x128xi32>
    %16 = vector.broadcast %6 : vector<8x1xi32> to vector<8x128xi32>
    %17 = arith.cmpi eq, %15, %16 : vector<8x128xi32>
    %18 = vector.broadcast %12 : vector<8x1xi1> to vector<8x128xi1>
    %19 = vector.broadcast %14 : vector<1x128xi1> to vector<8x128xi1>
    %20 = arith.andi %18, %19 : vector<8x128xi1>
    %cst_7 = arith.constant dense<true> : vector<8x128xi1>
    %21 = arith.xori %17, %cst_7 : vector<8x128xi1>
    %22 = arith.andi %20, %21 : vector<8x128xi1>
    %cst_8 = arith.constant 0.000000e+00 : f32
    %23 = vector.broadcast %cst_8 : f32 to vector<8x128xf32>
    %24 = arith.select %17, %5, %23 : vector<8x128xi1>, vector<8x128xf32>
    %cst_9 = arith.constant dense<0.000000e+00> : vector<8xf32>
    %25 = vector.multi_reduction <add>, %24, %cst_9 [1] : vector<8x128xf32> to vector<8xf32>
    %26 = vector.shape_cast %25 : vector<8xf32> to vector<8x1xf32>
    %cst_10 = arith.constant 0.000000e+00 : f32
    %27 = vector.broadcast %cst_10 : f32 to vector<8x1xf32>
    %28 = arith.subf %27, %26 : vector<8x1xf32>
    %29 = math.exp %28 : vector<8x1xf32>
    %c0_11 = arith.constant 0 : index
    %c0_12 = arith.constant 0 : index
    %30 = vector.load %arg5[%c0_11, %c0_12] : memref<1x128xf32, #tpu.memory_space<vmem>>, vector<1x128xf32>
    %cst_13 = arith.constant 0.000000e+00 : f32
    %31 = vector.shape_cast %29 : vector<8x1xf32> to vector<8x1xf32>
    %32 = vector.broadcast %31 : vector<8x1xf32> to vector<8x128xf32>
    %33 = vector.broadcast %cst_13 : f32 to vector<8x128xf32>
    %34 = arith.select %17, %32, %33 : vector<8x128xi1>, vector<8x128xf32>
    %cst_14 = arith.constant dense<0.000000e+00> : vector<128xf32>
    %35 = vector.multi_reduction <add>, %34, %cst_14 [0] : vector<8x128xf32> to vector<128xf32>
    %36 = vector.shape_cast %35 : vector<128xf32> to vector<1x128xf32>
    %37 = arith.addf %30, %36 : vector<1x128xf32>
    %c0_15 = arith.constant 0 : index
    %c0_16 = arith.constant 0 : index
    %38 = vector.load %arg5[%c0_15, %c0_16] : memref<1x128xf32, #tpu.memory_space<vmem>>, vector<1x128xf32>
    tpu.vector_store %arg5[%c0_15, %c0_16], %37 {strides = array<i32>} : memref<1x128xf32, #tpu.memory_space<vmem>>, vector<1x128xf32>,
    %c0_17 = arith.constant 0 : index
    %c0_18 = arith.constant 0 : index
    %39 = vector.load %arg6[%c0_17, %c0_18] : memref<1x128xf32, #tpu.memory_space<vmem>>, vector<1x128xf32>
    %40 = math.exp %5 : vector<8x128xf32>
    %cst_19 = arith.constant 0.000000e+00 : f32
    %41 = vector.broadcast %cst_19 : f32 to vector<8x128xf32>
    %42 = arith.select %22, %40, %41 : vector<8x128xi1>, vector<8x128xf32>
    %cst_20 = arith.constant dense<0.000000e+00> : vector<128xf32>
    %43 = vector.multi_reduction <add>, %42, %cst_20 [0] : vector<8x128xf32> to vector<128xf32>
    %44 = vector.shape_cast %43 : vector<128xf32> to vector<1x128xf32>
    %45 = arith.addf %39, %44 : vector<1x128xf32>
    %c0_21 = arith.constant 0 : index
    %c0_22 = arith.constant 0 : index
    %46 = vector.load %arg6[%c0_21, %c0_22] : memref<1x128xf32, #tpu.memory_space<vmem>>, vector<1x128xf32>
    tpu.vector_store %arg6[%c0_21, %c0_22], %45 {strides = array<i32>} : memref<1x128xf32, #tpu.memory_space<vmem>>, vector<1x128xf32>,
    return
  }
  func.func @transform_0(%arg0: i32, %arg1: i32) -> (i32, i32) {
    %c0_i32 = arith.constant 0 : i32
    %c0_i32_0 = arith.constant 0 : i32
    return %arg1, %c0_i32 : i32, i32
  }
  func.func @transform_1(%arg0: i32, %arg1: i32) -> (i32, i32) {
    %c0_i32 = arith.constant 0 : i32
    %c0_i32_0 = arith.constant 0 : i32
    return %arg0, %c0_i32 : i32, i32
  }
  func.func @transform_2(%arg0: i32, %arg1: i32) -> (i32, i32) {
    %c0_i32 = arith.constant 0 : i32
    %c0_i32_0 = arith.constant 0 : i32
    return %arg1, %c0_i32 : i32, i32
  }
  func.func @transform_3(%arg0: i32, %arg1: i32) -> (i32, i32) {
    %c0_i32 = arith.constant 0 : i32
    %c0_i32_0 = arith.constant 0 : i32
    return %c0_i32, %arg0 : i32, i32
  }
  func.func @transform_4(%arg0: i32, %arg1: i32) -> (i32, i32) {
    %c0_i32 = arith.constant 0 : i32
    %c0_i32_0 = arith.constant 0 : i32
    return %c0_i32, %arg0 : i32, i32
  }
}

</mosaic_0001>

<llo_original>
// kernel: tpu_custom_call.1
$region0: #{tpu_custom_call.1}
  #allocation0 [shape = 'u32[]', space=smem, size = 0x4, offset = 0x4, fixed_abs, tag = 'smem constant byte address 0x4 - core index']
  #allocation1 [shape = 'u32[144,128]{1,0:T(1,128)}', space=vmem, size = 0x12000, scoped, tag = 'internal scratch']
  %s0 = inlined_call_operand.vmem [shape: f32[8,32], index: 0, kind: input, shape index: {}]
  %s1 = inlined_call_operand.vmem [shape: f32[128,32], index: 1, kind: input, shape index: {}]
  %s2 = inlined_call_operand.vmem [shape: s32[8,1], index: 2, kind: input, shape index: {}]
  %s3 = inlined_call_operand.hbm [shape: f32[1,128], index: 3, kind: output, shape index: {0}]
  %s4 = inlined_call_operand.hbm [shape: f32[1,128], index: 4, kind: output, shape index: {1}]
  %5 = xla_tuple %s3, %s4
  %s6 = sld [smem:[#allocation0]]
  $region34: #{tpu_custom_call.1} parent=0
    _
  %s8 = ssub.s32 1, %s6
  %s9 = scalar_select 0, %s8, %s6
  $region1: #{tpu_custom_call.1} parent=0
    #allocation2 [shape = 'u8[512]{0}', space=vmem, size = 0x400, scoped, tag = 'output window, operand 0, single buffered']
    #allocation3 [shape = 's32[1]{0}', space=sflag, size = 0x4, scoped, tag = 'scoped memory for tpu_custom_call.1']
    #allocation4 [shape = 'u8[512]{0}', space=vmem, size = 0x400, scoped, tag = 'output window, operand 1, single buffered']
    #allocation5 [shape = 's32[1]{0}', space=sflag, size = 0x4, scoped, tag = 'scoped memory for tpu_custom_call.1']
    %10 = vsyncpa [#allocation3], 0
    %11 = vsyncpa [#allocation5], 0
    // Predicated region
    $region2: #{tpu_custom_call.1} parent=1 // pred_check
      _
    $region3: #{tpu_custom_call.1} parent=1 // pred_check_branch
      %13 = sbr.rel (0) target = $region5
    $region4: #{tpu_custom_call.1} parent=1 // pred_region
      _
    $region5: #{tpu_custom_call.1} parent=1 // pred_fallthru
      _
    // Predicated region
    $region6: #{tpu_custom_call.1} parent=1 // pred_check
      _
    $region7: #{tpu_custom_call.1} parent=1 // pred_check_branch
      %15 = sbr.rel (0) target = $region9
    $region8: #{tpu_custom_call.1} parent=1 // pred_region
      _
    $region9: #{tpu_custom_call.1} parent=1 // pred_fallthru
      _
    // Predicated region
    $region10: #{tpu_custom_call.1} parent=1 // pred_check
      _
    $region11: #{tpu_custom_call.1} parent=1 // pred_check_branch
      %17 = sbr.rel (0) target = $region13
    $region12: #{tpu_custom_call.1} parent=1 // pred_region
      _
    $region13: #{tpu_custom_call.1} parent=1 // pred_fallthru
      _
    %p18 = scmp.eq.s32.totalorder 0, 0
    // Predicated region
    $region14: #{tpu_custom_call.1} parent=1 // pred_check
      %p19 = pneg %p18
    $region15: #{tpu_custom_call.1} parent=1 // pred_check_branch
      %21 = sbr.rel (%p19) target = $region17
    $region16: #{tpu_custom_call.1} parent=1 // pred_region
      %22 = vst [vmem:[#allocation2] sm:$0x1] 0.0
      %23 = vst [vmem:[#allocation4] sm:$0x1] 0.0
    $region17: #{tpu_custom_call.1} parent=1 // pred_fallthru
      _
    %v24 = vld [vmem:[%s0] sm:$0xff]
    %v25 = vld [vmem:[%s1] sm:$0xff]
    %v26 = vld [vmem:[%s1 + $0x8] sm:$0xff]
    %v27 = vld [vmem:[%s1 + $0x10] sm:$0xff]
    %v28 = vld [vmem:[%s1 + $0x18] sm:$0xff]
    %v29 = vld [vmem:[%s1 + $0x20] sm:$0xff]
    %v30 = vld [vmem:[%s1 + $0x28] sm:$0xff]
    %v31 = vld [vmem:[%s1 + $0x30] sm:$0xff]
    %v32 = vld [vmem:[%s1 + $0x38] sm:$0xff]
    %v33 = vld [vmem:[%s1 + $0x40] sm:$0xff]
    %v34 = vld [vmem:[%s1 + $0x48] sm:$0xff]
    %v35 = vld [vmem:[%s1 + $0x50] sm:$0xff]
    %v36 = vld [vmem:[%s1 + $0x58] sm:$0xff]
    %v37 = vld [vmem:[%s1 + $0x60] sm:$0xff]
    %v38 = vld [vmem:[%s1 + $0x68] sm:$0xff]
    %v39 = vld [vmem:[%s1 + $0x70] sm:$0xff]
    %v40 = vld [vmem:[%s1 + $0x78] sm:$0xff]
    %vm41 = vcmask 261120
    %v43 = vsel %vm41, %v24, 0
    %v46 = vsel %vm41, %v25, 0
    %v49 = vsel %vm41, %v26, 0
    %v52 = vsel %vm41, %v27, 0
    %v55 = vsel %vm41, %v28, 0
    %v58 = vsel %vm41, %v29, 0
    %v61 = vsel %vm41, %v30, 0
    %v64 = vsel %vm41, %v31, 0
    %v67 = vsel %vm41, %v32, 0
    %v70 = vsel %vm41, %v33, 0
    %v73 = vsel %vm41, %v34, 0
    %v76 = vsel %vm41, %v35, 0
    %v79 = vsel %vm41, %v36, 0
    %v82 = vsel %vm41, %v37, 0
    %v85 = vsel %vm41, %v38, 0
    %v88 = vsel %vm41, %v39, 0
    %v91 = vsel %vm41, %v40, 0
    %93 = vmatprep.subr.mxu0 0.0
    %94 = vmatpush1.xpose.msra.mxu0 %v91
    %95 = vmatprep.subr.mxu0 0.0
    %96 = vmatpush1.xpose.msra.mxu0 %v88
    %97 = vmatprep.subr.mxu0 0.0
    %98 = vmatpush1.xpose.msra.mxu0 %v85
    %99 = vmatprep.subr.mxu0 0.0
    %100 = vmatpush1.xpose.msra.mxu0 %v82
    %101 = vmatprep.subr.mxu0 0.0
    %102 = vmatpush1.xpose.msra.mxu0 %v79
    %103 = vmatprep.subr.mxu0 0.0
    %104 = vmatpush1.xpose.msra.mxu0 %v76
    %105 = vmatprep.subr.mxu0 0.0
    %106 = vmatpush1.xpose.msra.mxu0 %v73
    %107 = vmatprep.subr.mxu0 0.0
    %108 = vmatpush1.xpose.msra.mxu0 %v70
    %109 = vmatprep.subr.mxu0 0.0
    %110 = vmatpush1.xpose.msra.mxu0 %v67
    %111 = vmatprep.subr.mxu0 0.0
    %112 = vmatpush1.xpose.msra.mxu0 %v64
    %113 = vmatprep.subr.mxu0 0.0
    %114 = vmatpush1.xpose.msra.mxu0 %v61
    %115 = vmatprep.subr.mxu0 0.0
    %116 = vmatpush1.xpose.msra.mxu0 %v58
    %117 = vmatprep.subr.mxu0 0.0
    %118 = vmatpush1.xpose.msra.mxu0 %v55
    %119 = vmatprep.subr.mxu0 0.0
    %120 = vmatpush1.xpose.msra.mxu0 %v52
    %121 = vmatprep.subr.mxu0 0.0
    %122 = vmatpush1.xpose.msra.mxu0 %v49
    %123 = vmatprep.subr.mxu0 0.0
    %124 = vmatpush1.xpose.msra.mxu0 %v46
    %125 = vmatprep.subr.mxu0 0.0
    %126 = vmatpush2.xpose.msra.mxu0 0.0
    %127 = vmatprep.subr.mxu0 0.0
    %128 = vmatpush2.xpose.msra.mxu0 0.0
    %129 = vmatprep.subr.mxu0 0.0
    %130 = vmatpush2.xpose.msra.mxu0 0.0
    %131 = vmatprep.subr.mxu0 0.0
    %132 = vmatpush2.xpose.msra.mxu0 0.0
    %133 = vmatprep.subr.mxu0 0.0
    %134 = vmatpush2.xpose.msra.mxu0 0.0
    %135 = vmatprep.subr.mxu0 0.0
    %136 = vmatpush2.xpose.msra.mxu0 0.0
    %137 = vmatprep.subr.mxu0 0.0
    %138 = vmatpush2.xpose.msra.mxu0 0.0
    %139 = vmatprep.subr.mxu0 0.0
    %140 = vmatpush2.xpose.msra.mxu0 0.0
    %141 = vmatprep.subr.mxu0 0.0
    %142 = vmatpush2.xpose.msra.mxu0 0.0
    %143 = vmatprep.subr.mxu0 0.0
    %144 = vmatpush2.xpose.msra.mxu0 0.0
    %145 = vmatprep.subr.mxu0 0.0
    %146 = vmatpush2.xpose.msra.mxu0 0.0
    %147 = vmatprep.subr.mxu0 0.0
    %148 = vmatpush2.xpose.msra.mxu0 0.0
    %149 = vmatprep.subr.mxu0 0.0
    %150 = vmatpush2.xpose.msra.mxu0 0.0
    %151 = vmatprep.subr.mxu0 0.0
    %152 = vmatpush2.xpose.msra.mxu0 0.0
    %153 = vmatprep.subr.mxu0 0.0
    %154 = vmatpush2.xpose.msra.mxu0 0.0
    %155 = vmatprep.subr.mxu0 0.0
    %156 = vmatpush2.xpose.msra.mxu0 0.0
    %157 = vmatprep.mubr.f32.mxu0 0.0
    %158 = vmatmul.mubr.f32.gmra.mxu0 %v43
    %v159 = vpop.f32.mrf.mxu0
    %v160 = vadd.f32 0.0, %v159
    %v161 = vpop.f32.mrf.mxu0
    %162 = vdwg.mxu0
    %v163 = vld [vmem:[%s2] sm:$0xff]
    %s164 = smul.u32 0, 128
    %v165 = vlaneseq
    %v166 = vand.u32 %v165, 127
    %v167 = vstv %s164
    %v168 = vadd.s32 %v167, %v166
    %vm169 = vcmp.ge.s32.totalorder %v163, 0
    %vm170 = vcmp.lt.s32.totalorder %v168, 16
    %171 = vset.pattern.permute.xlu0 0
    %172 = vperm.xlu0 %171, %v163
    %v173 = vpop.permute.xlu0 %172
    %vm174 = vcmp.eq.s32.totalorder %v168, %v173
    %v175 = vsel %vm169, 1, 0
    %176 = vset.pattern.permute.xlu0 0
    %177 = vperm.xlu0 %176, %v175
    %v178 = vpop.permute.xlu0 %177
    %vm179 = vcmp.eq.s32.totalorder %v178, 1
    %v180 = vsel %vm170, 1, 0
    %vm181 = vcmp.eq.s32.totalorder %v180, 1
    %vm182 = vmand %vm179, %vm181
    %vm183 = vmxor %vm174, 1
    %vm184 = vmand %vm182, %vm183
    %v185 = vsel %vm174, %v160, 0.0
    %186 = vadd.xlane.f32.xlu0 %v185
    %v187 = vpop.xlane.xlu0 %186
    %v188 = vsub.f32 0.0, %v187
    %v189 = vmul.f32 %v188, 1.442695
    %v190 = vpow.pop %v189
    %v191 = vld [vmem:[#allocation2] sm:$0x1]
    %v192 = vsel %vm174, %v190, 0.0
    %v193 = vrot.slane %v192, 4
    %v194 = vadd.f32 %v192, %v193
    %v195 = vrot.slane %v194, 2
    %v196 = vadd.f32 %v194, %v195
    %v197 = vrot.slane %v196, 1
    %v198 = vadd.f32 %v196, %v197
    %v199 = vadd.f32 %v191, %v198
    %200 = vst [vmem:[#allocation2] sm:$0x1] %v199
    %v201 = vld [vmem:[#allocation4] sm:$0x1]
    %v202 = vmul.f32 %v160, 1.442695
    %v203 = vpow.pop %v202
    %v204 = vsel %vm184, %v203, 0.0
    %v205 = vrot.slane %v204, 4
    %v206 = vadd.f32 %v204, %v205
    %v207 = vrot.slane %v206, 2
    %v208 = vadd.f32 %v206, %v207
    %v209 = vrot.slane %v208, 1
    %v210 = vadd.f32 %v208, %v209
    %v211 = vadd.f32 %v201, %v210
    %212 = vst [vmem:[#allocation4] sm:$0x1] %v211
    // Predicated region
    $region18: #{tpu_custom_call.1} parent=1 // pred_check
      _
    $region19: #{tpu_custom_call.1} parent=1 // pred_check_branch
      %214 = sbr.rel (0) target = $region21
    $region20: #{tpu_custom_call.1} parent=1 // pred_region
      %s216 = ssub.s32 16, 16
      %217 = vsyncadd [#allocation3], %s216
      %s219 = sshll.u32 [#allocation2], 4
      %s220 = int_to_ptr.vmem [resolvable:$true] %s219
      %222 = dma.vmem_to_hbm [thread:$0]  %s220, 16, %s3, [#allocation3]
    $region21: #{tpu_custom_call.1} parent=1 // pred_fallthru
      _
    // Predicated region
    $region22: #{tpu_custom_call.1} parent=1 // pred_check
      _
    $region23: #{tpu_custom_call.1} parent=1 // pred_check_branch
      %224 = sbr.rel (0) target = $region25
    $region24: #{tpu_custom_call.1} parent=1 // pred_region
      %s226 = ssub.s32 16, 16
      %227 = vsyncadd [#allocation5], %s226
      %s229 = sshll.u32 [#allocation4], 4
      %s230 = int_to_ptr.vmem [resolvable:$true] %s229
      %232 = dma.vmem_to_hbm [thread:$0]  %s230, 16, %s4, [#allocation5]
    $region25: #{tpu_custom_call.1} parent=1 // pred_fallthru
      _
    // Predicated region
    $region26: #{tpu_custom_call.1} parent=1 // pred_check
      _
    $region27: #{tpu_custom_call.1} parent=1 // pred_check_branch
      %234 = sbr.rel (0) target = $region29
    $region28: #{tpu_custom_call.1} parent=1 // pred_region
      %235 = dma.done [#allocation3], 16
    $region29: #{tpu_custom_call.1} parent=1 // pred_fallthru
      _
    // Predicated region
    $region30: #{tpu_custom_call.1} parent=1 // pred_check
      _
    $region31: #{tpu_custom_call.1} parent=1 // pred_check_branch
      %237 = sbr.rel (0) target = $region33
    $region32: #{tpu_custom_call.1} parent=1 // pred_region
      %238 = dma.done [#allocation5], 16
    $region33: #{tpu_custom_call.1} parent=1 // pred_fallthru
      _
    %239 = vsyncpa [#allocation3], 1
    %240 = vsyncpa [#allocation5], 1

</llo_original>
